<compile_context>
chip_gen: v7x
topology: tpu7x:2x2x1
jax: 0.10.0
libtpu: 0.0.40
codegen_flags: <defaults>
</compile_context>

<pallas_src>
import jax
import jax.numpy as jnp
from jax import lax
from jax.experimental import pallas as pl
from jax.experimental.pallas import tpu as pltpu


def _group_accuracy_kernel(preds_ref, targets_ref, out_ref):
    # preds_ref  : (TG, B, C) block of logits, native dtype (bf16 max/== exact)
    # targets_ref: (1, TG, B) int32 class ids (batch on the lane axis)
    # out_ref    : (1, 1, TG) float32 per-group accuracies (lane-dense row)
    p = preds_ref[...]                                  # no f32 upcast
    t = targets_ref[0]                                  # (TG, B)
    TG, B, C = p.shape

    # First-index argmax over the class (lane) axis, matching torch.argmax.
    mx = jnp.max(p, axis=-1, keepdims=True)             # (TG, B, 1)
    col = lax.broadcasted_iota(jnp.int32, (1, 1, C), 2) # broadcast, no full temp
    first_argmax = jnp.min(
        jnp.where(p == mx, col, jnp.int32(C)), axis=-1  # (TG, B)
    )
    # TODO(synk): on v7x/v6e (C~128) the two cross-lane reductions could be fused
    # into one via a packed sortable-key max, but that changes f32 tie-breaking,
    # so it is intentionally not done here.

    correct = (first_argmax == t).astype(jnp.float32)   # (TG, B)
    acc = jnp.sum(correct, axis=-1) / B                 # (TG,)
    out_ref[...] = acc.reshape(1, 1, TG)


def group_accuracy(preds, targets, *, max_block_bytes=8 * 1024 * 1024):
    """preds: (G, B, C) float32/bf16, targets: (G, B) int -> (G,) float32."""
    G, B, C = preds.shape
    targets = targets.astype(jnp.int32)
    itemsize = jnp.dtype(preds.dtype).itemsize
    bytes_per_group = max(B * C * itemsize, 1)

    # Groups per grid step: as many as fit in ~max_block_bytes of preds, but keep
    # at least 2 grid steps when G > 1 so the "parallel" axis can split across
    # v7x's two TensorCores.  tg has no alignment constraint (see BlockSpecs).
    tg = max(1, max_block_bytes // bytes_per_group)
    if G > 1:
        tg = min(tg, pl.cdiv(G, 2))
    tg = min(tg, G)
    n_steps = pl.cdiv(G, tg)      # ragged last block is fine: over-read groups
    g_pad = n_steps * tg          # yield garbage that is sliced off below

    # preds streamed as-is (no wrapper-side pad -> no extra HBM round trip).
    # Only the tiny targets array is padded; reshaping it to (n_steps, tg, B)
    # makes its block equal the full trailing dims, so tg needs no 8-alignment.
    if g_pad != G:
        targets = jnp.pad(targets, ((0, g_pad - G), (0, 0)))
    targets3 = targets.reshape(n_steps, tg, B)

    cost = pl.CostEstimate(
        flops=4 * G * B * C,
        transcendentals=0,
        bytes_accessed=G * B * C * itemsize + g_pad * B * 4 + g_pad * 4,
    )

    out = pl.pallas_call(
        _group_accuracy_kernel,
        out_shape=jax.ShapeDtypeStruct((n_steps, 1, tg), jnp.float32),
        grid_spec=pltpu.PrefetchScalarGridSpec(
            num_scalar_prefetch=0,
            grid=(n_steps,),
            in_specs=[
                pl.BlockSpec((tg, B, C), lambda g: (g, 0, 0)),
                pl.BlockSpec((1, tg, B), lambda g: (g, 0, 0)),
            ],
            out_specs=pl.BlockSpec((1, 1, tg), lambda g: (g, 0, 0)),
        ),
        compiler_params=pltpu.CompilerParams(
            dimension_semantics=("parallel",),     # groups independent; 2 TCs on v7x
            vmem_limit_bytes=48 * 1024 * 1024,     # blocks capped at ~8 MiB
        ),
        cost_estimate=cost,
    )(preds, targets3)
    return out.reshape(g_pad)[:G]


class GroupMetricPallas:
    """JAX/Pallas analogue of GroupMetric(metric_class=Accuracy, group_size=G)."""

    def __init__(self, group_size, names=None):
        self.group_size = group_size
        self.names = names
        if names is not None:
            assert len(names) == group_size

    def __call__(self, preds, targets):
        # preds: (G, B, C), targets: (G, B)
        assert preds.shape[0] == self.group_size
        per_group = group_accuracy(preds, targets)   # (G,)
        if self.names is None:
            return [per_group[i] for i in range(self.group_size)]
        return {self.names[i]: per_group[i] for i in range(self.group_size)}

    def mean(self, results):
        vals = results if self.names is None else list(results.values())
        return jnp.mean(jnp.stack(vals).astype(jnp.float32))


def _ref_accuracy(preds, targets):
    return jnp.mean(
        (jnp.argmax(preds.astype(jnp.float32), axis=-1) == targets).astype(jnp.float32),
        axis=-1,
    )


if __name__ == "__main__":
    key = jax.random.PRNGKey(0)
    kp, kt, kp2, kt2, kp3, kt3 = jax.random.split(key, 6)

    # Case 1: small canonical shapes; default cap -> tg=2, 2 steps, ragged last block.
    G, B, C = 3, 8, 128
    preds = jax.random.normal(kp, (G, B, C), dtype=jnp.float32)
    targets = jax.random.randint(kt, (G, B), 0, C, dtype=jnp.int32)

    metric = GroupMetricPallas(group_size=G, names=None)
    results = metric(preds, targets)
    results = [jax.block_until_ready(r) for r in results]
    got = jnp.stack(results)
    ref = _ref_accuracy(preds, targets)
    assert jnp.allclose(got, ref, atol=1e-6), (got, ref)
    _ = jax.block_until_ready(metric.mean(results))

    # Case 2: multi-step + ragged path with an unaligned tg (tg=7, G=20 -> 3 steps).
    G2 = 20
    preds2 = jax.random.normal(kp2, (G2, B, C), dtype=jnp.float32)
    targets2 = jax.random.randint(kt2, (G2, B), 0, C, dtype=jnp.int32)
    got2 = jax.block_until_ready(
        group_accuracy(preds2, targets2, max_block_bytes=7 * B * C * 4)
    )
    ref2 = _ref_accuracy(preds2, targets2)
    assert jnp.allclose(got2, ref2, atol=1e-6), (got2, ref2)

    # Case 3: bf16 preds exercise the native-dtype (no-upcast) path.
    G3, C3 = 5, 256
    preds3 = jax.random.normal(kp3, (G3, B, C3), dtype=jnp.bfloat16)
    targets3 = jax.random.randint(kt3, (G3, B), 0, C3, dtype=jnp.int32)
    got3 = jax.block_until_ready(group_accuracy(preds3, targets3))
    ref3 = _ref_accuracy(preds3, targets3)
    assert jnp.allclose(got3, ref3, atol=1e-6), (got3, ref3)

    print("KERNEL_OK")
</pallas_src>

<mosaic_0001>
module attributes {stable_mosaic.version = 11 : i64} {
  func.func @_group_accuracy_kernel(%arg0: i32, %arg1: memref<2x8x128xf32, #tpu.memory_space<vmem>>, %arg2: memref<1x2x8xi32, #tpu.memory_space<vmem>>, %arg3: memref<1x1x2xf32, #tpu.memory_space<vmem>>) attributes {dimension_semantics = [#tpu.dimension_semantics<parallel>], iteration_bounds = array<i64: 2>, scalar_prefetch = 0 : i64, scratch_operands = 0 : i64, tpu.core_type = #tpu.core_type<tc>, window_params = [{transform_indices = @transform_0, window_bounds = array<i64: 2, 8, 128>}, {transform_indices = @transform_1, window_bounds = array<i64: 1, 2, 8>}, {transform_indices = @transform_2, window_bounds = array<i64: 1, 1, 2>}]} {
    %c0 = arith.constant 0 : index
    %c0_0 = arith.constant 0 : index
    %c0_1 = arith.constant 0 : index
    %0 = vector.load %arg1[%c0, %c0_0, %c0_1] : memref<2x8x128xf32, #tpu.memory_space<vmem>>, vector<2x8x128xf32>
    %c0_2 = arith.constant 0 : index
    %c0_3 = arith.constant 0 : index
    %c0_4 = arith.constant 0 : index
    %1 = vector.load %arg2[%c0_2, %c0_3, %c0_4] : memref<1x2x8xi32, #tpu.memory_space<vmem>>, vector<1x2x8xi32>
    %2 = vector.shape_cast %1 : vector<1x2x8xi32> to vector<2x8xi32>
    %cst = arith.constant dense<0xFF800000> : vector<2x8xf32>
    %3 = vector.multi_reduction <maximumf>, %0, %cst [2] : vector<2x8x128xf32> to vector<2x8xf32>
    %4 = vector.shape_cast %3 : vector<2x8xf32> to vector<2x8x1xf32>
    %5 = tpu.iota {dimensions = array<i32: 2>} : vector<1x1x128xi32>
    %6 = vector.broadcast %4 : vector<2x8x1xf32> to vector<2x8x128xf32>
    %7 = arith.cmpf oeq, %0, %6 : vector<2x8x128xf32>
    %c128_i32 = arith.constant 128 : i32
    %8 = vector.shape_cast %5 : vector<1x1x128xi32> to vector<1x1x128xi32>
    %9 = vector.broadcast %8 : vector<1x1x128xi32> to vector<2x8x128xi32>
    %10 = vector.broadcast %c128_i32 : i32 to vector<2x8x128xi32>
    %11 = arith.select %7, %9, %10 : vector<2x8x128xi1>, vector<2x8x128xi32>
    %cst_5 = arith.constant dense<2147483647> : vector<2x8xi32>
    %12 = vector.multi_reduction <minsi>, %11, %cst_5 [2] : vector<2x8x128xi32> to vector<2x8xi32>
    %13 = arith.cmpi eq, %12, %2 : vector<2x8xi32>
    %14 = arith.extui %13 : vector<2x8xi1> to vector<2x8xi32>
    %15 = arith.sitofp %14 : vector<2x8xi32> to vector<2x8xf32>
    %cst_6 = arith.constant dense<0.000000e+00> : vector<2xf32>
    %16 = vector.multi_reduction <add>, %15, %cst_6 [1] : vector<2x8xf32> to vector<2xf32>
    %cst_7 = arith.constant 8.000000e+00 : f32
    %17 = vector.broadcast %cst_7 : f32 to vector<2xf32>
    %18 = arith.divf %16, %17 : vector<2xf32>
    %19 = vector.shape_cast %18 : vector<2xf32> to vector<1x1x2xf32>
    %c0_8 = arith.constant 0 : index
    %c0_9 = arith.constant 0 : index
    %c0_10 = arith.constant 0 : index
    %20 = vector.load %arg3[%c0_8, %c0_9, %c0_10] : memref<1x1x2xf32, #tpu.memory_space<vmem>>, vector<1x1x2xf32>
    tpu.vector_store %arg3[%c0_8, %c0_9, %c0_10], %19 {strides = array<i32>} : memref<1x1x2xf32, #tpu.memory_space<vmem>>, vector<1x1x2xf32>,
    return
  }
  func.func @transform_0(%arg0: i32) -> (i32, i32, i32) {
    %c0_i32 = arith.constant 0 : i32
    %c0_i32_0 = arith.constant 0 : i32
    %c0_i32_1 = arith.constant 0 : i32
    return %arg0, %c0_i32, %c0_i32_0 : i32, i32, i32
  }
  func.func @transform_1(%arg0: i32) -> (i32, i32, i32) {
    %c0_i32 = arith.constant 0 : i32
    %c0_i32_0 = arith.constant 0 : i32
    %c0_i32_1 = arith.constant 0 : i32
    return %arg0, %c0_i32, %c0_i32_0 : i32, i32, i32
  }
  func.func @transform_2(%arg0: i32) -> (i32, i32, i32) {
    %c0_i32 = arith.constant 0 : i32
    %c0_i32_0 = arith.constant 0 : i32
    %c0_i32_1 = arith.constant 0 : i32
    return %arg0, %c0_i32, %c0_i32_0 : i32, i32, i32
  }
}

</mosaic_0001>

<llo_original>
// kernel: tpu_custom_call.1
$region0: #{tpu_custom_call.1}
  #allocation0 [shape = 'u32[]', space=smem, size = 0x4, offset = 0x4, fixed_abs, tag = 'smem constant byte address 0x4 - core index']
  #allocation1 [shape = 'u32[144,128]{1,0:T(1,128)}', space=vmem, size = 0x12000, scoped, tag = 'internal scratch']
  %s0 = inlined_call_operand.hbm [shape: f32[3,8,128], index: 0, kind: input, shape index: {}]
  %s1 = inlined_call_operand.hbm [shape: s32[2,2,8], index: 1, kind: input, shape index: {}]
  %s2 = inlined_call_operand.hbm [shape: f32[2,1,2], index: 2, kind: output, shape index: {}]
  %s3 = sld [smem:[#allocation0]]
  $region49: #{tpu_custom_call.1} parent=0
    _
  %s5 = ssub.s32 1, %s3
  %s6 = scalar_select 0, %s5, %s3
  $region1: #{tpu_custom_call.1} parent=0
    #allocation2 [shape = 'u8[16384]{0}', space=vmem, size = 0x4000, scoped, tag = 'input window, operand 0']
    #allocation3 [shape = 's32[2]{0}', space=sflag, size = 0x8, scoped, tag = 'scoped memory for tpu_custom_call.1']
    #allocation4 [shape = 's32[2]{0}', space=sflag, size = 0x8, scoped, tag = 'scoped memory for tpu_custom_call.1']
    #allocation5 [shape = 'u8[2048]{0}', space=vmem, size = 0x800, scoped, tag = 'input window, operand 1']
    #allocation6 [shape = 's32[2]{0}', space=sflag, size = 0x8, scoped, tag = 'scoped memory for tpu_custom_call.1']
    #allocation7 [shape = 'u8[1024]{0}', space=vmem, size = 0x400, scoped, tag = 'output window, operand 0']
    %7 = vsyncpa [#allocation3], 0
    %s8 = scalar_lea.sflag [#allocation3], 1
    %9 = vsyncpa %s8, 0
    %10 = vsyncpa [#allocation6], 0
    %s11 = scalar_lea.sflag [#allocation6], 1
    %12 = vsyncpa %s11, 0
    %13 = vsyncpa [#allocation4], 0
    %s14 = scalar_lea.sflag [#allocation4], 1
    %15 = vsyncpa %s14, 0
    loop: start=0, step=1, limit=4
    $region2: #{tpu_custom_call.1} parent=1 // loop_pre_header
      _
    $region3: #{tpu_custom_call.1} parent=1 // loop_header
      %s17 = sphi 0, %s21
      %p18 = scmp.ge.s32.totalorder %s17, 4
      %s27 = sphi 0, %s29
      %s30 = sphi 0, %s27
      %s31 = sphi 0, %s30
      %s47 = sphi 0, %s31
      %s53 = sphi 0, %s55
      %s56 = sphi 0, %s53
      %s57 = sphi 0, %s56
      %s73 = sphi 0, %s57
      %s79 = sphi 0, %s81
      %s82 = sphi 0, %s79
      %s83 = sphi 0, %s82
      %s99 = sphi 0, %s83
    $region4: #{tpu_custom_call.1} parent=1 // loop_header_branch
      %20 = sbr.rel (%p18) target = $region8
    $region5: #{tpu_custom_call.1} parent=1 // loop_body
      %s22 = ssub.s32 %s17, 1
      %s23 = ssub.s32 %s17, 2
      %s24 = sadd.s32 %s17, 1
      %s25 = ssub.s32 %s17, %s24
      %p26 = scmp.eq.s32.totalorder %s25, 0
      %s28 = sadd.s32 %s27, 1
      %s29 = scalar_select %p26, %s27, %s28
      %p32 = pneg %p26
      %p33 = scmp.eq.s32.totalorder %s17, 1
      %p34 = por %p32, %p33
      %p35 = scmp.ne.s32.totalorder %s27, %s30
      %p36 = scmp.eq.s32.totalorder %s17, 0
      %p37 = por %p35, %p36
      %p38 = scmp.ne.s32.totalorder %s27, %s30
      %p39 = scmp.eq.s32.totalorder %s22, 1
      %p40 = por %p38, %p39
      %p41 = scmp.ne.s32.totalorder %s30, %s31
      %p42 = scmp.eq.s32.totalorder %s22, 0
      %p43 = por %p41, %p42
      %p44 = scmp.ne.s32.totalorder %s30, %s31
      %p45 = scmp.eq.s32.totalorder %s23, 1
      %p46 = por %p44, %p45
      %p48 = scmp.ne.s32.totalorder %s31, %s47
      %p49 = scmp.eq.s32.totalorder %s23, 0
      %p50 = por %p48, %p49
      %s51 = ssub.s32 %s17, %s24
      %p52 = scmp.eq.s32.totalorder %s51, 0
      %s54 = sadd.s32 %s53, 1
      %s55 = scalar_select %p52, %s53, %s54
      %p58 = pneg %p52
      %p59 = scmp.eq.s32.totalorder %s17, 1
      %p60 = por %p58, %p59
      %p61 = scmp.ne.s32.totalorder %s53, %s56
      %p62 = scmp.eq.s32.totalorder %s17, 0
      %p63 = por %p61, %p62
      %p64 = scmp.ne.s32.totalorder %s53, %s56
      %p65 = scmp.eq.s32.totalorder %s22, 1
      %p66 = por %p64, %p65
      %p67 = scmp.ne.s32.totalorder %s56, %s57
      %p68 = scmp.eq.s32.totalorder %s22, 0
      %p69 = por %p67, %p68
      %p70 = scmp.ne.s32.totalorder %s56, %s57
      %p71 = scmp.eq.s32.totalorder %s23, 1
      %p72 = por %p70, %p71
      %p74 = scmp.ne.s32.totalorder %s57, %s73
      %p75 = scmp.eq.s32.totalorder %s23, 0
      %p76 = por %p74, %p75
      %s77 = ssub.s32 %s17, %s24
      %p78 = scmp.eq.s32.totalorder %s77, 0
      %s80 = sadd.s32 %s79, 1
      %s81 = scalar_select %p78, %s79, %s80
      %p84 = pneg %p78
      %p85 = scmp.eq.s32.totalorder %s17, 1
      %p86 = por %p84, %p85
      %p87 = scmp.ne.s32.totalorder %s79, %s82
      %p88 = scmp.eq.s32.totalorder %s17, 0
      %p89 = por %p87, %p88
      %p90 = scmp.ne.s32.totalorder %s79, %s82
      %p91 = scmp.eq.s32.totalorder %s22, 1
      %p92 = por %p90, %p91
      %p93 = scmp.ne.s32.totalorder %s82, %s83
      %p94 = scmp.eq.s32.totalorder %s22, 0
      %p95 = por %p93, %p94
      %p96 = scmp.ne.s32.totalorder %s82, %s83
      %p97 = scmp.eq.s32.totalorder %s23, 1
      %p98 = por %p96, %p97
      %p100 = scmp.ne.s32.totalorder %s83, %s99
      %p101 = scmp.eq.s32.totalorder %s23, 0
      %p102 = por %p100, %p101
      %p103 = scmp.le.s32.totalorder 1, %s17
      %p104 = scmp.lt.s32.totalorder %s17, 3
      %p105 = pnand %p103, %p104
      %p106 = pneg %p105
      // Predicated region
      $region9: #{tpu_custom_call.1} parent=5 // pred_check
        _
      $region10: #{tpu_custom_call.1} parent=5 // pred_check_branch
        %108 = sbr.rel (%p105) target = $region12
      $region11: #{tpu_custom_call.1} parent=5 // pred_region
        %s109 = ssub.s32 %s17, 1
      $region12: #{tpu_custom_call.1} parent=5 // pred_fallthru
        _
      %p110 = scmp.lt.s32.totalorder %s17, 2
      // Predicated region
      $region13: #{tpu_custom_call.1} parent=5 // pred_check
        %p111 = pneg %p110
      $region14: #{tpu_custom_call.1} parent=5 // pred_check_branch
        %113 = sbr.rel (%p111) target = $region16
      $region15: #{tpu_custom_call.1} parent=5 // pred_region
        // Predicated region
        $region17: #{tpu_custom_call.1} parent=15 // pred_check
          %p114 = pneg %p37
        $region18: #{tpu_custom_call.1} parent=15 // pred_check_branch
          %116 = sbr.rel (%p114) target = $region20
        $region19: #{tpu_custom_call.1} parent=15 // pred_region
          %s117 = sand.u32 %s27, 1
          %s118 = scalar_lea.sflag [#allocation3], %s117
          %s119 = sand.u32 %s27, 1
          %s120 = smul.addr %s119, 16
          %s121 = scalar_lea.vmem [#allocation2], %s120
          %s122 = smul.u32 2, %s17
          %s123 = ssub.s32 3, %s122
          %p124 = scmp.lt.s32.totalorder %s123, 2
          %s125 = scalar_select %p124, %s123, 2
          %s126 = smul.u32 128, %s125
          %s128 = ssub.s32 256, %s126
          %129 = vsyncadd %s118, %s128
          %p130 = scmp.ne.s32.totalorder 0, %s126
          %s131 = smul.addr %s122, 128
          %s132 = scalar_lea.hbm %s0, %s131
          %s133 = smul.u32 8, %s125
          %s134 = sshll.u32 %s121, 4
          %s135 = int_to_ptr.vmem [resolvable:$true] %s134
          %s136 = sshll.u32 %s133, 4
          %140 = dma.hbm_to_vmem [thread:$0]  (%p130), %s132, %s136, %s135, %s118, 128, 128, 8
        $region20: #{tpu_custom_call.1} parent=15 // pred_fallthru
          _
        // Predicated region
        $region21: #{tpu_custom_call.1} parent=15 // pred_check
          %p141 = pneg %p63
        $region22: #{tpu_custom_call.1} parent=15 // pred_check_branch
          %143 = sbr.rel (%p141) target = $region24
        $region23: #{tpu_custom_call.1} parent=15 // pred_region
          %s144 = sand.u32 %s53, 1
          %s145 = scalar_lea.sflag [#allocation6], %s144
          %s146 = sand.u32 %s53, 1
          %s147 = smul.addr %s146, 2
          %s148 = scalar_lea.vmem [#allocation5], %s147
          %s150 = ssub.s32 32, 32
          %151 = vsyncadd %s145, %s150
          %s152 = smul.addr %s17, 32
          %s153 = scalar_lea.hbm %s1, %s152
          %s155 = sshll.u32 %s148, 4
          %s156 = int_to_ptr.vmem [resolvable:$true] %s155
          %158 = dma.hbm_to_vmem [thread:$0]  %s153, 32, %s156, %s145
        $region24: #{tpu_custom_call.1} parent=15 // pred_fallthru
          _
      $region16: #{tpu_custom_call.1} parent=5 // pred_fallthru
        _
      %p159 = scmp.le.s32.totalorder 1, %s17
      %p160 = scmp.lt.s32.totalorder %s17, 3
      %p161 = pnand %p159, %p160
      %p162 = pneg %p161
      // Predicated region
      $region25: #{tpu_custom_call.1} parent=5 // pred_check
        _
      $region26: #{tpu_custom_call.1} parent=5 // pred_check_branch
        %164 = sbr.rel (%p161) target = $region28
      $region27: #{tpu_custom_call.1} parent=5 // pred_region
        %s165 = ssub.s32 %s17, 1
        %s166 = sand.u32 %s30, 1
        %s167 = scalar_lea.sflag [#allocation3], %s166
        %s168 = sand.u32 %s30, 1
        %s169 = smul.addr %s168, 16
        %s170 = scalar_lea.vmem [#allocation2], %s169
        // Predicated region
        $region29: #{tpu_custom_call.1} parent=27 // pred_check
          %p171 = pneg %p43
        $region30: #{tpu_custom_call.1} parent=27 // pred_check_branch
          %173 = sbr.rel (%p171) target = $region32
        $region31: #{tpu_custom_call.1} parent=27 // pred_region
          %174 = dma.done %s167, 256
        $region32: #{tpu_custom_call.1} parent=27 // pred_fallthru
          _
        %s175 = sand.u32 %s56, 1
        %s176 = scalar_lea.sflag [#allocation6], %s175
        %s177 = sand.u32 %s56, 1
        %s178 = smul.addr %s177, 2
        %s179 = scalar_lea.vmem [#allocation5], %s178
        // Predicated region
        $region33: #{tpu_custom_call.1} parent=27 // pred_check
          %p180 = pneg %p69
        $region34: #{tpu_custom_call.1} parent=27 // pred_check_branch
          %182 = sbr.rel (%p180) target = $region36
        $region35: #{tpu_custom_call.1} parent=27 // pred_region
          %183 = dma.done %s176, 32
        $region36: #{tpu_custom_call.1} parent=27 // pred_fallthru
          _
        %s184 = sand.u32 %s30, 1
        %s185 = scalar_lea.sflag [#allocation3], %s184
        %s186 = sand.u32 %s30, 1
        %s187 = smul.addr %s186, 16
        %s188 = scalar_lea.vmem [#allocation2], %s187
        %p189 = pneg %p43
        %p190 = pneg %p40
        %s191 = sand.u32 %s56, 1
        %s192 = scalar_lea.sflag [#allocation6], %s191
        %s193 = sand.u32 %s56, 1
        %s194 = smul.addr %s193, 2
        %s195 = scalar_lea.vmem [#allocation5], %s194
        %p196 = pneg %p69
        %p197 = pneg %p66
        %p198 = pneg %p95
        %p199 = pneg %p92
        %s200 = sand.u32 %s82, 1
        %s201 = scalar_lea.sflag [#allocation4], %s200
        %s202 = sand.u32 %s82, 1
        %s203 = scalar_lea.vmem [#allocation7], %s202
        %s204 = smul.u32 2, %s22
        %s205 = ssub.s32 3, %s204
        %p206 = scmp.lt.s32.totalorder %s205, 2
        %s207 = scalar_select %p206, %s205, 2
        %s208 = smul.u32 128, %s207
        %v209 = vld [vmem:[%s170] sm:$0xff]
        %v210 = vld [vmem:[%s170 + $0x8] sm:$0xff]
        %v211 = vld [vmem:[%s179] sm:$0x3]
        %212 = vmax.xlane.f32.xlu0 %v209
        %v213 = vpop.xlane.xlu0 %212
        %214 = vmax.xlane.f32.xlu0 %v210
        %v215 = vpop.xlane.xlu0 %214
        %v216 = vlaneseq
        %v217 = vand.u32 %v216, 127
        %vm218 = vcmp.eq.f32.partialorder %v209, %v213
        %vm219 = vcmp.eq.f32.partialorder %v210, %v215
        %v220 = vsel %vm218, %v217, 128
        %v221 = vsel %vm219, %v217, 128
        %v222 = vand.u32 %v220, 65535
        %v223 = vshra.s32 %v220, 16
        %v224 = vcvt.s32.f32 %v222
        %v225 = vcvt.s32.f32 %v223
        %226 = vmin.xlane.f32.xlu0 %v225
        %v227 = vpop.xlane.xlu0 %226
        %vm228 = vcmp.eq.f32.partialorder %v225, %v227
        %v229 = vsel %vm228, %v224, inf
        %230 = vmin.xlane.f32.xlu0 %v229
        %v231 = vpop.xlane.xlu0 %230
        %v232 = vcvt.f32.s32 %v231
        %v233 = vcvt.f32.s32 %v227
        %v234 = vshll.u32 %v233, 16
        %v235 = vadd.s32 %v234, %v232
        %v236 = vand.u32 %v221, 65535
        %v237 = vshra.s32 %v221, 16
        %v238 = vcvt.s32.f32 %v236
        %v239 = vcvt.s32.f32 %v237
        %240 = vmin.xlane.f32.xlu0 %v239
        %v241 = vpop.xlane.xlu0 %240
        %vm242 = vcmp.eq.f32.partialorder %v239, %v241
        %v243 = vsel %vm242, %v238, inf
        %244 = vmin.xlane.f32.xlu0 %v243
        %v245 = vpop.xlane.xlu0 %244
        %v246 = vcvt.f32.s32 %v245
        %v247 = vcvt.f32.s32 %v241
        %v248 = vshll.u32 %v247, 16
        %v249 = vadd.s32 %v248, %v246
        %v250 = vlaneseq
        %v251 = vshrl.u32 %v250, 7
        %v252 = vsub.s32 0, %v251
        %v253 = vrot.slane %v211, %v252
        %255 = vbcast.lane.b32.xlu0 %v253, 256
        %v256 = vpop.permute.xlu0 %255
        %v257 = vlaneseq
        %v258 = vshrl.u32 %v257, 7
        %v259 = vsub.s32 1, %v258
        %v260 = vrot.slane %v211, %v259
        %262 = vbcast.lane.b32.xlu0 %v260, 256
        %v263 = vpop.permute.xlu0 %262
        %vm264 = vcmp.eq.s32.totalorder %v235, %v256
        %vm265 = vcmp.eq.s32.totalorder %v249, %v263
        %v266 = vsel %vm264, 1, 0
        %v267 = vsel %vm265, 1, 0
        %v268 = vcvt.s32.f32 %v266
        %v269 = vcvt.s32.f32 %v267
        %272 = vset.pattern.permute.xlu0 0
        %273 = vperm.xlu0 %272, %v268
        %v274 = vpop.permute.xlu0 %273
        %275 = vset.pattern.permute.xlu0 0
        %276 = vperm.xlu0 %275, %v269
        %v277 = vpop.permute.xlu0 %276
        %v278 = vlaneseq
        %v279 = vshrl.u32 %v278, 7
        %v280 = vsub.s32 %v217, %v279
        %v281 = vrot.slane %v274, %v280
        %v282 = vlaneseq
        %v283 = vshrl.u32 %v282, 7
        %v284 = vsub.s32 %v217, %v283
        %v285 = vrot.slane %v277, %v284
        %vm286 = vcmask 1041409
        %v287 = vsel %vm286, %v285, %v281
        %vm289 = vcmask 58368
        %v290 = vsel %vm289, %v287, 0.0
        %291 = vadd.xlane.f32.xlu0 %v290
        %v292 = vpop.xlane.xlu0 %291
        %v293 = vrcp.pop 8.0
        %v294 = vmul.f32 %v292, %v293
        %v296 = vlaneseq
        %v297 = vshrl.u32 %v296, 7
        %v298 = vsub.s32 %v217, %v297
        %v299 = vrot.slane %v294, %v298
        %vm301 = vcmask 8192
        %302 = vst.msk [vmem:[%s203] sm:$0x1] %vm301, %v299
        %s303 = sand.u32 %s82, 1
        %s304 = scalar_lea.sflag [#allocation4], %s303
        %s305 = sand.u32 %s82, 1
        %s306 = scalar_lea.vmem [#allocation7], %s305
        // Predicated region
        $region37: #{tpu_custom_call.1} parent=27 // pred_check
          %p307 = pneg %p92
        $region38: #{tpu_custom_call.1} parent=27 // pred_check_branch
          %309 = sbr.rel (%p307) target = $region40
        $region39: #{tpu_custom_call.1} parent=27 // pred_region
          %s311 = ssub.s32 16, 16
          %312 = vsyncadd %s304, %s311
          %s313 = smul.addr %s22, 16
          %s314 = scalar_lea.hbm %s2, %s313
          %s316 = sshll.u32 %s306, 4
          %s317 = int_to_ptr.vmem [resolvable:$true] %s316
          %319 = dma.vmem_to_hbm [thread:$0]  %s317, 16, %s314, %s304
        $region40: #{tpu_custom_call.1} parent=27 // pred_fallthru
          _
      $region28: #{tpu_custom_call.1} parent=5 // pred_fallthru
        _
      %p320 = scmp.le.s32.totalorder 2, %s17
      // Predicated region
      $region41: #{tpu_custom_call.1} parent=5 // pred_check
        %p321 = pneg %p320
      $region42: #{tpu_custom_call.1} parent=5 // pred_check_branch
        %323 = sbr.rel (%p321) target = $region44
      $region43: #{tpu_custom_call.1} parent=5 // pred_region
        %s324 = ssub.s32 %s17, 2
        // Predicated region
        $region45: #{tpu_custom_call.1} parent=43 // pred_check
          %p325 = pneg %p98
        $region46: #{tpu_custom_call.1} parent=43 // pred_check_branch
          %327 = sbr.rel (%p325) target = $region48
        $region47: #{tpu_custom_call.1} parent=43 // pred_region
          %s328 = sand.u32 %s83, 1
          %s329 = scalar_lea.sflag [#allocation4], %s328
          %s330 = sand.u32 %s83, 1
          %s331 = scalar_lea.vmem [#allocation7], %s330
          %332 = dma.done %s329, 16
        $region48: #{tpu_custom_call.1} parent=43 // pred_fallthru
          _
      $region44: #{tpu_custom_call.1} parent=5 // pred_fallthru
        _
    $region6: #{tpu_custom_call.1} parent=1 // loop_footer
      %s21 = sadd.s32 1, %s17
    $region7: #{tpu_custom_call.1} parent=1 // loop_footer_branch
      %16 = sbr.rel target = $region3
    $region8: #{tpu_custom_call.1} parent=1 // loop_exit
      _
    %333 = vsyncpa [#allocation3], 1
    %s334 = scalar_lea.sflag [#allocation3], 1
    %335 = vsyncpa %s334, 1
    %336 = vsyncpa [#allocation6], 1
    %s337 = scalar_lea.sflag [#allocation6], 1
    %338 = vsyncpa %s337, 1
    %339 = vsyncpa [#allocation4], 1
    %s340 = scalar_lea.sflag [#allocation4], 1
    %341 = vsyncpa %s340, 1

</llo_original>
